<compile_context>
chip_gen: v5e
topology: v5e:2x2
jax: 0.10.0
libtpu: 0.0.40
codegen_flags: <defaults>
</compile_context>

<pallas_src>
import functools

import jax
import jax.numpy as jnp
from jax import lax
from jax.experimental import pallas as pl
from jax.experimental.pallas import tpu as pltpu


def _cdiv(a, b):
    return -(-a // b)


def _rup(a, m):
    return _cdiv(a, m) * m


def _rb_kernel(xb_ref, xl_ref, xr_ref, w1_ref, b1_ref, w2_ref, b2_ref, o_ref,
               *, Nb, TB, TS, H, d, K, c_in, c_out, L):
    """One grid step: Nb batch rows x one TB-lane chunk of the sequence.

    xb_ref: (Nb, c_in, TB)   lanes [t0, t0+TB)
    xl_ref: (Nb, c_in, H)    lanes [t0-H, t0)        (index clamped; masked)
    xr_ref: (Nb, c_in, H)    lanes [t0+TB, t0+TB+H)  (index clamped; masked)
    w1_ref: (K, c_out, c_in) f32,  w2_ref: (K, c_out, c_out) f32
    b1_ref, b2_ref: (c_out, 1) f32
    o_ref : (Nb, c_out, TB)
    """
    t0 = pl.program_id(1) * TB
    nsub = TB // TS
    TSe = TS + 2 * d          # hidden width per sub-tile
    TW = TS + 4 * d           # input window width per sub-tile

    b1 = b1_ref[...]
    b2 = b2_ref[...]

    # Residual channel widening as an identity projector (Cout, Cin), folded
    # into the conv2 accumulation (the MXU slot is essentially idle here).
    ri = lax.broadcasted_iota(jnp.int32, (c_out, c_in), 0)
    ci = lax.broadcasted_iota(jnp.int32, (c_out, c_in), 1)
    id_pad = (ri == ci).astype(jnp.float32)

    # Hoisted iotas; the global-position masks implement the Conv1d zero
    # padding and also kill garbage from ragged / clamped boundary blocks.
    iota_w = lax.broadcasted_iota(jnp.int32, (1, TW), 1)
    iota_h = lax.broadcasted_iota(jnp.int32, (1, TSe), 1)

    for b in range(Nb):                 # static; Nb > 1 only when nsub == 1
        for s in range(nsub):           # static in-kernel sub-tile loop (<=8)
            s0 = s * TS
            # ---- (c_in, TW) input window: lanes [t0+s0-2d, t0+s0+TS+2d) ----
            parts = []
            if s == 0:
                parts.append(xl_ref[b, :, H - 2 * d:])
                lo = 0
            else:
                lo = s0 - 2 * d
            if s == nsub - 1:
                parts.append(xb_ref[b, :, lo:TB])
                parts.append(xr_ref[b, :, :2 * d])
            else:
                parts.append(xb_ref[b, :, lo:s0 + TS + 2 * d])
            xw = parts[0] if len(parts) == 1 else jnp.concatenate(parts, axis=-1)

            g0 = t0 + s0 - 2 * d                     # global pos of xw column 0
            pos = g0 + iota_w
            xw = jnp.where((pos >= 0) & (pos < L), xw, 0.0)

            # ---- conv1: K accumulated (Cout, Cin) @ (Cin, TSe) dots --------
            h = b1
            for k in range(K):
                h = h + jnp.dot(w1_ref[k], xw[:, k * d:k * d + TSe],
                                preferred_element_type=jnp.float32)
            h = jnp.maximum(h, 0.0)
            hpos = (g0 + d) + iota_h
            h = jnp.where((hpos >= 0) & (hpos < L), h, 0.0)   # conv2 zero-pad

            # ---- conv2 + residual (channel pad via identity dot) -----------
            res = xw[:, 2 * d:2 * d + TS]                     # (c_in, TS)
            y = b2 + jnp.dot(id_pad, res, preferred_element_type=jnp.float32)
            for k in range(K):
                y = y + jnp.dot(w2_ref[k], h[:, k * d:k * d + TS],
                                preferred_element_type=jnp.float32)
            o_ref[b, :, s0:s0 + TS] = jnp.maximum(y, 0.0).astype(o_ref.dtype)


def residual_block(x, w1, b1, w2, b2, *, dilation=1, out_dtype=None,
                   lane_block=None, sub_tile=None):
    """Pallas TPU forward of ResidualBlock.

    x : (N, Cin, L) float32 (PyTorch Conv1d layout).
    w1: (Cout, Cin, K), b1: (Cout,), w2: (Cout, Cout, K), b2: (Cout,)
    Returns (N, Cout, L) in out_dtype (default: x.dtype).
    """
    N, c_in, L = x.shape
    c_out, c_in_w, K = w1.shape
    assert c_in_w == c_in
    assert c_out >= c_in, "ResidualBlock requires out_channels >= in_channels"
    d = int(dilation)
    # padding=dilation preserves L (needed for the residual add) only if K==3.
    assert K == 3 and d >= 1, "residual add requires kernel_size == 3, dilation >= 1"
    out_dtype = jnp.dtype(x.dtype if out_dtype is None else out_dtype)

    # f32 tap-major weights / column biases (no bf16 downcast: MXU is ~idle at
    # these channel counts, f32 keeps parity with the PyTorch module).
    w1_t = jnp.transpose(w1, (2, 0, 1)).astype(jnp.float32)   # (K, Cout, Cin)
    w2_t = jnp.transpose(w2, (2, 0, 1)).astype(jnp.float32)   # (K, Cout, Cout)
    b1_c = b1.reshape(c_out, 1).astype(jnp.float32)
    b2_c = b2.reshape(c_out, 1).astype(jnp.float32)
    x = x.astype(jnp.float32)

    # ---- tiling -------------------------------------------------------------
    H = _rup(2 * d, 128)                       # halo block (>= 2*d boundary cols)
    if sub_tile is None:                       # compute sub-tile: ~512 lanes,
        TS = min(512, max(128, ((16384 // max(c_out, 1)) // 128) * 128))
        TS = min(TS, _rup(L, 128))             # shrunk for big Cout / tiny L
    else:
        TS = _rup(int(sub_tile), 128)
    TS = _rup(max(TS, H), H)

    if lane_block is None:                     # DMA block: large, channel-aware
        cap = max(TS, ((1 << 20) // max(c_in + c_out, 1)) // TS * TS)
        TB = min(4096, cap)
    else:
        TB = max(TS, _rup(int(lane_block), TS))
    TB = min(TB, _rup(L, TS))
    nsub = TB // TS
    nt = _cdiv(L, TB)

    # Fold several batch rows per grid step when each row is one small sub-tile.
    Nb = min(N, 8) if (nsub == 1 and N > 1) else 1
    nbs = _cdiv(N, Nb)
    # v7x has 2 TensorCores: expose >= 2 parallel grid steps when there is work.
    if nbs * nt < 2:
        if N >= 2:
            Nb = _cdiv(N, 2)
            nbs = _cdiv(N, Nb)
        elif L >= 2 * TS:
            TB = _rup(_cdiv(L, 2), TS)
            nsub = TB // TS
            nt = _cdiv(L, TB)

    r = TB // H
    hmax = max(_cdiv(L, H) - 1, 0)

    kernel = functools.partial(_rb_kernel, Nb=Nb, TB=TB, TS=TS, H=H, d=d, K=K,
                               c_in=c_in, c_out=c_out, L=L)

    in_specs = [
        pl.BlockSpec((Nb, c_in, TB), lambda nb, t: (nb, 0, t)),             # body
        pl.BlockSpec((Nb, c_in, H),
                     lambda nb, t: (nb, 0, jnp.maximum(t * r - 1, 0))),     # left
        pl.BlockSpec((Nb, c_in, H),
                     lambda nb, t: (nb, 0, jnp.minimum(t * r + r, hmax))),  # right
        pl.BlockSpec((K, c_out, c_in), lambda nb, t: (0, 0, 0)),
        pl.BlockSpec((c_out, 1), lambda nb, t: (0, 0)),
        pl.BlockSpec((K, c_out, c_out), lambda nb, t: (0, 0, 0)),
        pl.BlockSpec((c_out, 1), lambda nb, t: (0, 0)),
    ]
    out_spec = pl.BlockSpec((Nb, c_out, TB), lambda nb, t: (nb, 0, t))

    flops = 2 * N * L * c_out * (K * (c_in + c_out) + c_in)
    bytes_accessed = (4 * N * c_in * (L + 2 * H * nt)          # x (1 pass) + halos
                      + out_dtype.itemsize * N * c_out * L     # y
                      + 4 * (w1_t.size + w2_t.size + b1_c.size + b2_c.size))

    return pl.pallas_call(
        kernel,
        out_shape=jax.ShapeDtypeStruct((N, c_out, L), out_dtype),
        grid_spec=pltpu.PrefetchScalarGridSpec(
            num_scalar_prefetch=0,
            grid=(nbs, nt),
            in_specs=in_specs,
            out_specs=out_spec,
        ),
        compiler_params=pltpu.CompilerParams(
            dimension_semantics=("parallel", "parallel"),
            # blocks are capped well below this on every generation (<= ~9 MiB)
            vmem_limit_bytes=32 * 1024 * 1024,
        ),
        cost_estimate=pl.CostEstimate(
            flops=int(flops), transcendentals=0,
            bytes_accessed=int(bytes_accessed)),
    )(x, x, x, w1_t, b1_c, w2_t, b2_c)


def _reference(x, w1, b1, w2, b2, *, dilation=1):
    """Pure-JAX f32 reference replicating PyTorch ResidualBlock.forward."""
    d = dilation
    c_out, c_in, _ = w1.shape

    def conv1d(x, w, b):
        y = lax.conv_general_dilated(
            x, w, window_strides=(1,), padding=[(d, d)], rhs_dilation=(d,),
            dimension_numbers=("NCH", "OIH", "NCH"))
        return y + b[None, :, None]

    h = jax.nn.relu(conv1d(x, w1, b1))
    y = conv1d(h, w2, b2)
    pad_x = jnp.pad(x, ((0, 0), (0, c_out - c_in), (0, 0)))
    return jax.nn.relu(y + pad_x)


if __name__ == "__main__":
    key = jax.random.PRNGKey(0)

    def make_case(k, N, c_in, c_out, L, K=3):
        k_x, k_w1, k_b1, k_w2, k_b2 = jax.random.split(k, 5)
        x = jax.random.normal(k_x, (N, c_in, L), dtype=jnp.float32)
        w1 = jax.random.normal(k_w1, (c_out, c_in, K), dtype=jnp.float32) * 0.2
        b1 = jax.random.normal(k_b1, (c_out,), dtype=jnp.float32) * 0.1
        w2 = jax.random.normal(k_w2, (c_out, c_out, K), dtype=jnp.float32) * 0.2
        b2 = jax.random.normal(k_b2, (c_out,), dtype=jnp.float32) * 0.1
        return x, w1, b1, w2, b2

    def check(out, ref, name, atol=1e-1):
        assert out.shape == ref.shape, name
        err = jnp.abs(out.astype(jnp.float32) - ref)
        ok = bool(jnp.all(err <= atol + 1e-1 * jnp.abs(ref)))
        assert ok, f"{name}: elementwise mismatch"
        assert float(jnp.mean(err)) < 1e-2, f"{name}: mean error too large"

    k1, k2, k3, k4 = jax.random.split(key, 4)

    # Case 1: tiny shapes consistent with the module; also checks bf16 output.
    x, w1, b1, w2, b2 = make_case(k1, N=2, c_in=4, c_out=8, L=16)
    out = jax.block_until_ready(residual_block(x, w1, b1, w2, b2, dilation=1))
    ref = _reference(x, w1, b1, w2, b2, dilation=1)
    check(out, ref, "case1")
    out_bf = jax.block_until_ready(
        residual_block(x, w1, b1, w2, b2, dilation=1, out_dtype=jnp.bfloat16))
    assert out_bf.dtype == jnp.bfloat16
    check(out_bf, ref, "case1-bf16", atol=2e-1)

    # Case 2: dilation 2, two in-kernel sub-tiles, ragged lane block.
    x, w1, b1, w2, b2 = make_case(k2, N=2, c_in=4, c_out=8, L=640)
    out = jax.block_until_ready(residual_block(x, w1, b1, w2, b2, dilation=2))
    check(out, _reference(x, w1, b1, w2, b2, dilation=2), "case2")

    # Case 3: c_in == c_out, batch folding (Nb > 1) with a ragged batch block.
    x, w1, b1, w2, b2 = make_case(k3, N=5, c_in=8, c_out=8, L=300)
    out = jax.block_until_ready(residual_block(x, w1, b1, w2, b2, dilation=1))
    check(out, _reference(x, w1, b1, w2, b2, dilation=1), "case3")

    # Case 4: long sequence -> multiple lane blocks with real inter-block
    # halos, interior sub-tiles, dilation 3, ragged last block.
    x, w1, b1, w2, b2 = make_case(k4, N=2, c_in=4, c_out=8, L=9000)
    out = jax.block_until_ready(residual_block(x, w1, b1, w2, b2, dilation=3))
    check(out, _reference(x, w1, b1, w2, b2, dilation=3), "case4")

    print("KERNEL_OK")
</pallas_src>

<mosaic_0001>
module attributes {stable_mosaic.version = 11 : i64} {
  func.func @_rb_kernel(%arg0: i32, %arg1: i32, %arg2: memref<1x4x128xf32, #tpu.memory_space<vmem>>, %arg3: memref<1x4x128xf32, #tpu.memory_space<vmem>>, %arg4: memref<1x4x128xf32, #tpu.memory_space<vmem>>, %arg5: memref<3x8x4xf32, #tpu.memory_space<vmem>>, %arg6: memref<8x1xf32, #tpu.memory_space<vmem>>, %arg7: memref<3x8x8xf32, #tpu.memory_space<vmem>>, %arg8: memref<8x1xf32, #tpu.memory_space<vmem>>, %arg9: memref<1x8x128xf32, #tpu.memory_space<vmem>>) attributes {dimension_semantics = [#tpu.dimension_semantics<parallel>, #tpu.dimension_semantics<parallel>], iteration_bounds = array<i64: 2, 1>, scalar_prefetch = 0 : i64, scratch_operands = 0 : i64, tpu.core_type = #tpu.core_type<tc>, window_params = [{transform_indices = @transform_0, window_bounds = array<i64: 1, 4, 128>}, {transform_indices = @transform_1, window_bounds = array<i64: 1, 4, 128>}, {transform_indices = @transform_2, window_bounds = array<i64: 1, 4, 128>}, {pipeline_mode = #tpu.pipeline_mode<synchronous>, transform_indices = @transform_3, window_bounds = array<i64: 3, 8, 4>}, {pipeline_mode = #tpu.pipeline_mode<synchronous>, transform_indices = @transform_4, window_bounds = array<i64: 8, 1>}, {pipeline_mode = #tpu.pipeline_mode<synchronous>, transform_indices = @transform_5, window_bounds = array<i64: 3, 8, 8>}, {pipeline_mode = #tpu.pipeline_mode<synchronous>, transform_indices = @transform_6, window_bounds = array<i64: 8, 1>}, {transform_indices = @transform_7, window_bounds = array<i64: 1, 8, 128>}]} {
    %c128_i32 = arith.constant 128 : i32
    %0 = arith.muli %arg1, %c128_i32 : i32
    %c0 = arith.constant 0 : index
    %c0_0 = arith.constant 0 : index
    %1 = vector.load %arg6[%c0, %c0_0] : memref<8x1xf32, #tpu.memory_space<vmem>>, vector<8x1xf32>
    %c0_1 = arith.constant 0 : index
    %c0_2 = arith.constant 0 : index
    %2 = vector.load %arg8[%c0_1, %c0_2] : memref<8x1xf32, #tpu.memory_space<vmem>>, vector<8x1xf32>
    %3 = tpu.iota {dimensions = array<i32: 0>} : vector<8x4xi32>
    %4 = tpu.iota {dimensions = array<i32: 1>} : vector<8x4xi32>
    %5 = arith.cmpi eq, %3, %4 : vector<8x4xi32>
    %6 = arith.extui %5 : vector<8x4xi1> to vector<8x4xi32>
    %7 = arith.sitofp %6 : vector<8x4xi32> to vector<8x4xf32>
    %8 = tpu.iota {dimensions = array<i32: 1>} : vector<1x132xi32>
    %9 = tpu.iota {dimensions = array<i32: 1>} : vector<1x130xi32>
    %c0_3 = arith.constant 0 : index
    %c0_4 = arith.constant 0 : index
    %c126 = arith.constant 126 : index
    %10 = vector.load %arg3[%c0_3, %c0_4, %c126] : memref<1x4x128xf32, #tpu.memory_space<vmem>>, vector<1x4x2xf32>
    %11 = vector.shape_cast %10 : vector<1x4x2xf32> to vector<4x2xf32>
    %c0_5 = arith.constant 0 : index
    %c0_6 = arith.constant 0 : index
    %c0_7 = arith.constant 0 : index
    %12 = vector.load %arg2[%c0_5, %c0_6, %c0_7] : memref<1x4x128xf32, #tpu.memory_space<vmem>>, vector<1x4x128xf32>
    %13 = vector.shape_cast %12 : vector<1x4x128xf32> to vector<4x128xf32>
    %c0_8 = arith.constant 0 : index
    %c0_9 = arith.constant 0 : index
    %c0_10 = arith.constant 0 : index
    %14 = vector.load %arg4[%c0_8, %c0_9, %c0_10] : memref<1x4x128xf32, #tpu.memory_space<vmem>>, vector<1x4x2xf32>
    %15 = vector.shape_cast %14 : vector<1x4x2xf32> to vector<4x2xf32>
    %16 = tpu.concatenate %11, %13, %15 in 1 : vector<4x2xf32>, vector<4x128xf32>, vector<4x2xf32> -> vector<4x132xf32>
    %c0_i32 = arith.constant 0 : i32
    %17 = arith.addi %0, %c0_i32 : i32
    %c2_i32 = arith.constant 2 : i32
    %18 = arith.subi %17, %c2_i32 : i32
    %19 = vector.broadcast %18 : i32 to vector<1x132xi32>
    %20 = arith.addi %19, %8 : vector<1x132xi32>
    %c0_i32_11 = arith.constant 0 : i32
    %21 = vector.broadcast %c0_i32_11 : i32 to vector<1x132xi32>
    %22 = arith.cmpi sge, %20, %21 : vector<1x132xi32>
    %c16_i32 = arith.constant 16 : i32
    %23 = vector.broadcast %c16_i32 : i32 to vector<1x132xi32>
    %24 = arith.cmpi slt, %20, %23 : vector<1x132xi32>
    %25 = arith.andi %22, %24 : vector<1x132xi1>
    %cst = arith.constant 0.000000e+00 : f32
    %26 = vector.shape_cast %25 : vector<1x132xi1> to vector<1x132xi1>
    %27 = vector.broadcast %26 : vector<1x132xi1> to vector<4x132xi1>
    %28 = vector.broadcast %cst : f32 to vector<4x132xf32>
    %29 = arith.select %27, %16, %28 : vector<4x132xi1>, vector<4x132xf32>
    %c0_12 = arith.constant 0 : index
    %c0_13 = arith.constant 0 : index
    %c0_14 = arith.constant 0 : index
    %30 = vector.load %arg5[%c0_12, %c0_13, %c0_14] : memref<3x8x4xf32, #tpu.memory_space<vmem>>, vector<1x8x4xf32>
    %31 = vector.shape_cast %30 : vector<1x8x4xf32> to vector<8x4xf32>
    %32 = vector.extract_strided_slice %29 {offsets = [0, 0], sizes = [4, 130], strides = [1, 1]} : vector<4x132xf32> to vector<4x130xf32>
    %cst_15 = arith.constant dense<0.000000e+00> : vector<8x130xf32>
    %33 = tpu.matmul %31, %32, %cst_15 {dimension_numbers = #tpu.dot_dimension_numbers<[1], [0], [0], [1], [0, 0, 1, 1], [], []>} : vector<8x4xf32>, vector<4x130xf32>, vector<8x130xf32> -> vector<8x130xf32>
    %34 = vector.broadcast %1 : vector<8x1xf32> to vector<8x130xf32>
    %35 = arith.addf %34, %33 : vector<8x130xf32>
    %c1 = arith.constant 1 : index
    %c0_16 = arith.constant 0 : index
    %c0_17 = arith.constant 0 : index
    %36 = vector.load %arg5[%c1, %c0_16, %c0_17] : memref<3x8x4xf32, #tpu.memory_space<vmem>>, vector<1x8x4xf32>
    %37 = vector.shape_cast %36 : vector<1x8x4xf32> to vector<8x4xf32>
    %38 = vector.extract_strided_slice %29 {offsets = [0, 1], sizes = [4, 130], strides = [1, 1]} : vector<4x132xf32> to vector<4x130xf32>
    %cst_18 = arith.constant dense<0.000000e+00> : vector<8x130xf32>
    %39 = tpu.matmul %37, %38, %cst_18 {dimension_numbers = #tpu.dot_dimension_numbers<[1], [0], [0], [1], [0, 0, 1, 1], [], []>} : vector<8x4xf32>, vector<4x130xf32>, vector<8x130xf32> -> vector<8x130xf32>
    %40 = arith.addf %35, %39 : vector<8x130xf32>
    %c2 = arith.constant 2 : index
    %c0_19 = arith.constant 0 : index
    %c0_20 = arith.constant 0 : index
    %41 = vector.load %arg5[%c2, %c0_19, %c0_20] : memref<3x8x4xf32, #tpu.memory_space<vmem>>, vector<1x8x4xf32>
    %42 = vector.shape_cast %41 : vector<1x8x4xf32> to vector<8x4xf32>
    %43 = vector.extract_strided_slice %29 {offsets = [0, 2], sizes = [4, 130], strides = [1, 1]} : vector<4x132xf32> to vector<4x130xf32>
    %cst_21 = arith.constant dense<0.000000e+00> : vector<8x130xf32>
    %44 = tpu.matmul %42, %43, %cst_21 {dimension_numbers = #tpu.dot_dimension_numbers<[1], [0], [0], [1], [0, 0, 1, 1], [], []>} : vector<8x4xf32>, vector<4x130xf32>, vector<8x130xf32> -> vector<8x130xf32>
    %45 = arith.addf %40, %44 : vector<8x130xf32>
    %cst_22 = arith.constant 0.000000e+00 : f32
    %46 = vector.broadcast %cst_22 : f32 to vector<8x130xf32>
    %47 = arith.maximumf %45, %46 : vector<8x130xf32>
    %c1_i32 = arith.constant 1 : i32
    %48 = arith.addi %18, %c1_i32 : i32
    %49 = vector.broadcast %48 : i32 to vector<1x130xi32>
    %50 = arith.addi %49, %9 : vector<1x130xi32>
    %c0_i32_23 = arith.constant 0 : i32
    %51 = vector.broadcast %c0_i32_23 : i32 to vector<1x130xi32>
    %52 = arith.cmpi sge, %50, %51 : vector<1x130xi32>
    %c16_i32_24 = arith.constant 16 : i32
    %53 = vector.broadcast %c16_i32_24 : i32 to vector<1x130xi32>
    %54 = arith.cmpi slt, %50, %53 : vector<1x130xi32>
    %55 = arith.andi %52, %54 : vector<1x130xi1>
    %cst_25 = arith.constant 0.000000e+00 : f32
    %56 = vector.shape_cast %55 : vector<1x130xi1> to vector<1x130xi1>
    %57 = vector.broadcast %56 : vector<1x130xi1> to vector<8x130xi1>
    %58 = vector.broadcast %cst_25 : f32 to vector<8x130xf32>
    %59 = arith.select %57, %47, %58 : vector<8x130xi1>, vector<8x130xf32>
    %60 = vector.extract_strided_slice %29 {offsets = [0, 2], sizes = [4, 128], strides = [1, 1]} : vector<4x132xf32> to vector<4x128xf32>
    %cst_26 = arith.constant dense<0.000000e+00> : vector<8x128xf32>
    %61 = tpu.matmul %7, %60, %cst_26 {dimension_numbers = #tpu.dot_dimension_numbers<[1], [0], [0], [1], [0, 0, 1, 1], [], []>} : vector<8x4xf32>, vector<4x128xf32>, vector<8x128xf32> -> vector<8x128xf32>
    %62 = vector.broadcast %2 : vector<8x1xf32> to vector<8x128xf32>
    %63 = arith.addf %62, %61 : vector<8x128xf32>
    %c0_27 = arith.constant 0 : index
    %c0_28 = arith.constant 0 : index
    %c0_29 = arith.constant 0 : index
    %64 = vector.load %arg7[%c0_27, %c0_28, %c0_29] : memref<3x8x8xf32, #tpu.memory_space<vmem>>, vector<1x8x8xf32>
    %65 = vector.shape_cast %64 : vector<1x8x8xf32> to vector<8x8xf32>
    %66 = vector.extract_strided_slice %59 {offsets = [0, 0], sizes = [8, 128], strides = [1, 1]} : vector<8x130xf32> to vector<8x128xf32>
    %cst_30 = arith.constant dense<0.000000e+00> : vector<8x128xf32>
    %67 = tpu.matmul %65, %66, %cst_30 {dimension_numbers = #tpu.dot_dimension_numbers<[1], [0], [0], [1], [0, 0, 1, 1], [], []>} : vector<8x8xf32>, vector<8x128xf32>, vector<8x128xf32> -> vector<8x128xf32>
    %68 = arith.addf %63, %67 : vector<8x128xf32>
    %c1_31 = arith.constant 1 : index
    %c0_32 = arith.constant 0 : index
    %c0_33 = arith.constant 0 : index
    %69 = vector.load %arg7[%c1_31, %c0_32, %c0_33] : memref<3x8x8xf32, #tpu.memory_space<vmem>>, vector<1x8x8xf32>
    %70 = vector.shape_cast %69 : vector<1x8x8xf32> to vector<8x8xf32>
    %71 = vector.extract_strided_slice %59 {offsets = [0, 1], sizes = [8, 128], strides = [1, 1]} : vector<8x130xf32> to vector<8x128xf32>
    %cst_34 = arith.constant dense<0.000000e+00> : vector<8x128xf32>
    %72 = tpu.matmul %70, %71, %cst_34 {dimension_numbers = #tpu.dot_dimension_numbers<[1], [0], [0], [1], [0, 0, 1, 1], [], []>} : vector<8x8xf32>, vector<8x128xf32>, vector<8x128xf32> -> vector<8x128xf32>
    %73 = arith.addf %68, %72 : vector<8x128xf32>
    %c2_35 = arith.constant 2 : index
    %c0_36 = arith.constant 0 : index
    %c0_37 = arith.constant 0 : index
    %74 = vector.load %arg7[%c2_35, %c0_36, %c0_37] : memref<3x8x8xf32, #tpu.memory_space<vmem>>, vector<1x8x8xf32>
    %75 = vector.shape_cast %74 : vector<1x8x8xf32> to vector<8x8xf32>
    %76 = vector.extract_strided_slice %59 {offsets = [0, 2], sizes = [8, 128], strides = [1, 1]} : vector<8x130xf32> to vector<8x128xf32>
    %cst_38 = arith.constant dense<0.000000e+00> : vector<8x128xf32>
    %77 = tpu.matmul %75, %76, %cst_38 {dimension_numbers = #tpu.dot_dimension_numbers<[1], [0], [0], [1], [0, 0, 1, 1], [], []>} : vector<8x8xf32>, vector<8x128xf32>, vector<8x128xf32> -> vector<8x128xf32>
    %78 = arith.addf %73, %77 : vector<8x128xf32>
    %cst_39 = arith.constant 0.000000e+00 : f32
    %79 = vector.broadcast %cst_39 : f32 to vector<8x128xf32>
    %80 = arith.maximumf %78, %79 : vector<8x128xf32>
    %c0_40 = arith.constant 0 : index
    %c0_41 = arith.constant 0 : index
    %c0_42 = arith.constant 0 : index
    %81 = vector.load %arg9[%c0_40, %c0_41, %c0_42] : memref<1x8x128xf32, #tpu.memory_space<vmem>>, vector<1x8x128xf32>
    %82 = vector.shape_cast %81 : vector<1x8x128xf32> to vector<8x128xf32>
    %83 = vector.shape_cast %80 : vector<8x128xf32> to vector<1x8x128xf32>
    tpu.vector_store %arg9[%c0_40, %c0_41, %c0_42], %83 {strides = array<i32>} : memref<1x8x128xf32, #tpu.memory_space<vmem>>, vector<1x8x128xf32>,
    return
  }
  func.func @transform_0(%arg0: i32, %arg1: i32) -> (i32, i32, i32) {
    %c0_i32 = arith.constant 0 : i32
    %c0_i32_0 = arith.constant 0 : i32
    return %arg0, %c0_i32, %arg1 : i32, i32, i32
  }
  func.func @transform_1(%arg0: i32, %arg1: i32) -> (i32, i32, i32) {
    %c1_i32 = arith.constant 1 : i32
    %0 = arith.muli %arg1, %c1_i32 : i32
    %c1_i32_0 = arith.constant 1 : i32
    %1 = arith.subi %0, %c1_i32_0 : i32
    %c0_i32 = arith.constant 0 : i32
    %2 = arith.maxsi %1, %c0_i32 : i32
    %c0_i32_1 = arith.constant 0 : i32
    %c0_i32_2 = arith.constant 0 : i32
    return %arg0, %c0_i32_1, %2 : i32, i32, i32
  }
  func.func @transform_2(%arg0: i32, %arg1: i32) -> (i32, i32, i32) {
    %c1_i32 = arith.constant 1 : i32
    %0 = arith.muli %arg1, %c1_i32 : i32
    %c1_i32_0 = arith.constant 1 : i32
    %1 = arith.addi %0, %c1_i32_0 : i32
    %c0_i32 = arith.constant 0 : i32
    %2 = arith.minsi %1, %c0_i32 : i32
    %c0_i32_1 = arith.constant 0 : i32
    %c0_i32_2 = arith.constant 0 : i32
    return %arg0, %c0_i32_1, %2 : i32, i32, i32
  }
  func.func @transform_3(%arg0: i32, %arg1: i32) -> (i32, i32, i32) {
    %c0_i32 = arith.constant 0 : i32
    %c0_i32_0 = arith.constant 0 : i32
    %c0_i32_1 = arith.constant 0 : i32
    %c0_i32_2 = arith.constant 0 : i32
    return %c0_i32, %c0_i32_0, %c0_i32_1 : i32, i32, i32
  }
  func.func @transform_4(%arg0: i32, %arg1: i32) -> (i32, i32) {
    %c0_i32 = arith.constant 0 : i32
    %c0_i32_0 = arith.constant 0 : i32
    %c0_i32_1 = arith.constant 0 : i32
    return %c0_i32, %c0_i32_0 : i32, i32
  }
  func.func @transform_5(%arg0: i32, %arg1: i32) -> (i32, i32, i32) {
    %c0_i32 = arith.constant 0 : i32
    %c0_i32_0 = arith.constant 0 : i32
    %c0_i32_1 = arith.constant 0 : i32
    %c0_i32_2 = arith.constant 0 : i32
    return %c0_i32, %c0_i32_0, %c0_i32_1 : i32, i32, i32
  }
  func.func @transform_6(%arg0: i32, %arg1: i32) -> (i32, i32) {
    %c0_i32 = arith.constant 0 : i32
    %c0_i32_0 = arith.constant 0 : i32
    %c0_i32_1 = arith.constant 0 : i32
    return %c0_i32, %c0_i32_0 : i32, i32
  }
  func.func @transform_7(%arg0: i32, %arg1: i32) -> (i32, i32, i32) {
    %c0_i32 = arith.constant 0 : i32
    %c0_i32_0 = arith.constant 0 : i32
    return %arg0, %c0_i32, %arg1 : i32, i32, i32
  }
}

</mosaic_0001>

<llo_original>
// kernel: tpu_custom_call.1
$region0: #{tpu_custom_call.1}
  #allocation0 [shape = 'u32[]', space=smem, size = 0x4, offset = 0x4, fixed_abs, tag = 'smem constant byte address 0x4 - core index']
  #allocation1 [shape = 'u32[72,128]{1,0:T(1,128)}', space=vmem, size = 0x9000, scoped, tag = 'internal scratch']
  %s0 = inlined_call_operand.vmem [shape: f32[2,4,16], index: 0, kind: input, shape index: {}]
  %s1 = inlined_call_operand.vmem [shape: f32[2,4,16], index: 1, kind: input, shape index: {}]
  %s2 = inlined_call_operand.hbm [shape: f32[2,4,16], index: 2, kind: input, shape index: {}]
  %s3 = inlined_call_operand.vmem [shape: f32[3,8,4], index: 3, kind: input, shape index: {}]
  %s4 = inlined_call_operand.vmem [shape: f32[8,1], index: 4, kind: input, shape index: {}]
  %s5 = inlined_call_operand.vmem [shape: f32[3,8,8], index: 5, kind: input, shape index: {}]
  %s6 = inlined_call_operand.vmem [shape: f32[8,1], index: 6, kind: input, shape index: {}]
  %s7 = inlined_call_operand.hbm [shape: f32[2,8,16], index: 7, kind: output, shape index: {}]
  %s8 = sld [smem:[#allocation0]]
  $region65: #{tpu_custom_call.1} parent=0
    _
  %s10 = ssub.s32 1, %s8
  %s11 = scalar_select 0, %s10, %s8
  $region1: #{tpu_custom_call.1} parent=0
    #allocation2 [shape = 'u8[4096]{0}', space=vmem, size = 0x1000, scoped, tag = 'input window, operand 2']
    #allocation3 [shape = 's32[2]{0}', space=sflag, size = 0x8, scoped, tag = 'scoped memory for tpu_custom_call.1']
    #allocation4 [shape = 's32[2]{0}', space=sflag, size = 0x8, scoped, tag = 'scoped memory for tpu_custom_call.1']
    #allocation5 [shape = 'u8[8192]{0}', space=vmem, size = 0x2000, scoped, tag = 'output window, operand 0']
    %12 = vsyncpa [#allocation3], 0
    %s13 = scalar_lea.sflag [#allocation3], 1
    %14 = vsyncpa %s13, 0
    %15 = vsyncpa [#allocation4], 0
    %s16 = scalar_lea.sflag [#allocation4], 1
    %17 = vsyncpa %s16, 0
    loop: start=0, step=1, limit=4
    $region2: #{tpu_custom_call.1} parent=1 // loop_pre_header
      _
    $region3: #{tpu_custom_call.1} parent=1 // loop_header
      %s19 = sphi 0, %s23
      %p20 = scmp.ge.s32.totalorder %s19, 4
      %s26 = sphi 0, %s38
      %s27 = sphi 0, %s34
      %s28 = sphi 0, %s26
      %s29 = sphi 0, %s27
      %s30 = sphi 0, %s28
      %s31 = sphi 0, %s29
      %s43 = sphi 0, %s45
      %s46 = sphi 0, %s43
      %s47 = sphi 0, %s46
      %s63 = sphi 0, %s47
      %s77 = sphi 0, %s79
      %s80 = sphi 0, %s77
      %s81 = sphi 0, %s80
      %s97 = sphi 0, %s81
      %s111 = sphi 0, %s113
      %s114 = sphi 0, %s111
      %s115 = sphi 0, %s114
      %s131 = sphi 0, %s115
      %s135 = sphi 0, %s135
      %s137 = sphi 0, %s135
      %s138 = sphi 0, %s137
      %s152 = sphi 0, %s138
      %s156 = sphi 0, %s156
      %s158 = sphi 0, %s156
      %s159 = sphi 0, %s158
      %s173 = sphi 0, %s159
      %s177 = sphi 0, %s177
      %s179 = sphi 0, %s177
      %s180 = sphi 0, %s179
      %s194 = sphi 0, %s180
      %s198 = sphi 0, %s198
      %s200 = sphi 0, %s198
      %s201 = sphi 0, %s200
      %s215 = sphi 0, %s201
      %s223 = sphi 0, %s225
      %s226 = sphi 0, %s223
      %s227 = sphi 0, %s226
      %s243 = sphi 0, %s227
    $region4: #{tpu_custom_call.1} parent=1 // loop_header_branch
      %22 = sbr.rel (%p20) target = $region8
    $region5: #{tpu_custom_call.1} parent=1 // loop_body
      %s24 = ssub.s32 %s19, 1
      %s25 = ssub.s32 %s19, 2
      %s32 = sadd.s32 1, %s27
      %p33 = scmp.ge.s32.totalorder %s32, 1
      %s34 = scalar_select %p33, 0, %s32
      %s35 = sadd.s32 1, %s26
      %s36 = scalar_select %p33, %s35, %s26
      %p37 = scmp.ge.s32.totalorder %s36, 2
      %s38 = scalar_select %p37, 0, %s36
      %s39 = ssub.s32 %s26, %s38
      %s40 = ssub.s32 %s27, %s34
      %s41 = sor.u32 %s39, %s40
      %p42 = scmp.eq.s32.totalorder %s41, 0
      %s44 = sadd.s32 %s43, 1
      %s45 = scalar_select %p42, %s43, %s44
      %p48 = pneg %p42
      %p49 = scmp.eq.s32.totalorder %s19, 1
      %p50 = por %p48, %p49
      %p51 = scmp.ne.s32.totalorder %s43, %s46
      %p52 = scmp.eq.s32.totalorder %s19, 0
      %p53 = por %p51, %p52
      %p54 = scmp.ne.s32.totalorder %s43, %s46
      %p55 = scmp.eq.s32.totalorder %s24, 1
      %p56 = por %p54, %p55
      %p57 = scmp.ne.s32.totalorder %s46, %s47
      %p58 = scmp.eq.s32.totalorder %s24, 0
      %p59 = por %p57, %p58
      %p60 = scmp.ne.s32.totalorder %s46, %s47
      %p61 = scmp.eq.s32.totalorder %s25, 1
      %p62 = por %p60, %p61
      %p64 = scmp.ne.s32.totalorder %s47, %s63
      %p65 = scmp.eq.s32.totalorder %s25, 0
      %p66 = por %p64, %p65
      %s67 = ssub.s32 %s27, 1
      %p68 = scmp.gt.s32.totalorder %s67, 0
      %s69 = scalar_select %p68, %s67, 0
      %s70 = ssub.s32 %s34, 1
      %p71 = scmp.gt.s32.totalorder %s70, 0
      %s72 = scalar_select %p71, %s70, 0
      %s73 = ssub.s32 %s26, %s38
      %s74 = ssub.s32 %s69, %s72
      %s75 = sor.u32 %s73, %s74
      %p76 = scmp.eq.s32.totalorder %s75, 0
      %s78 = sadd.s32 %s77, 1
      %s79 = scalar_select %p76, %s77, %s78
      %p82 = pneg %p76
      %p83 = scmp.eq.s32.totalorder %s19, 1
      %p84 = por %p82, %p83
      %p85 = scmp.ne.s32.totalorder %s77, %s80
      %p86 = scmp.eq.s32.totalorder %s19, 0
      %p87 = por %p85, %p86
      %p88 = scmp.ne.s32.totalorder %s77, %s80
      %p89 = scmp.eq.s32.totalorder %s24, 1
      %p90 = por %p88, %p89
      %p91 = scmp.ne.s32.totalorder %s80, %s81
      %p92 = scmp.eq.s32.totalorder %s24, 0
      %p93 = por %p91, %p92
      %p94 = scmp.ne.s32.totalorder %s80, %s81
      %p95 = scmp.eq.s32.totalorder %s25, 1
      %p96 = por %p94, %p95
      %p98 = scmp.ne.s32.totalorder %s81, %s97
      %p99 = scmp.eq.s32.totalorder %s25, 0
      %p100 = por %p98, %p99
      %s101 = sadd.s32 %s27, 1
      %p102 = scmp.lt.s32.totalorder %s101, 0
      %s103 = scalar_select %p102, %s101, 0
      %s104 = sadd.s32 %s34, 1
      %p105 = scmp.lt.s32.totalorder %s104, 0
      %s106 = scalar_select %p105, %s104, 0
      %s107 = ssub.s32 %s26, %s38
      %s108 = ssub.s32 %s103, %s106
      %s109 = sor.u32 %s107, %s108
      %p110 = scmp.eq.s32.totalorder %s109, 0
      %s112 = sadd.s32 %s111, 1
      %s113 = scalar_select %p110, %s111, %s112
      %p116 = pneg %p110
      %p117 = scmp.eq.s32.totalorder %s19, 1
      %p118 = por %p116, %p117
      %p119 = scmp.ne.s32.totalorder %s111, %s114
      %p120 = scmp.eq.s32.totalorder %s19, 0
      %p121 = por %p119, %p120
      %p122 = scmp.ne.s32.totalorder %s111, %s114
      %p123 = scmp.eq.s32.totalorder %s24, 1
      %p124 = por %p122, %p123
      %p125 = scmp.ne.s32.totalorder %s114, %s115
      %p126 = scmp.eq.s32.totalorder %s24, 0
      %p127 = por %p125, %p126
      %p128 = scmp.ne.s32.totalorder %s114, %s115
      %p129 = scmp.eq.s32.totalorder %s25, 1
      %p130 = por %p128, %p129
      %p132 = scmp.ne.s32.totalorder %s115, %s131
      %p133 = scmp.eq.s32.totalorder %s25, 0
      %p134 = por %p132, %p133
      %s136 = sadd.s32 %s135, 1
      %p139 = scmp.eq.s32.totalorder %s19, 1
      %p140 = scmp.ne.s32.totalorder %s135, %s137
      %p141 = scmp.eq.s32.totalorder %s19, 0
      %p142 = por %p140, %p141
      %p143 = scmp.ne.s32.totalorder %s135, %s137
      %p144 = scmp.eq.s32.totalorder %s24, 1
      %p145 = por %p143, %p144
      %p146 = scmp.ne.s32.totalorder %s137, %s138
      %p147 = scmp.eq.s32.totalorder %s24, 0
      %p148 = por %p146, %p147
      %p149 = scmp.ne.s32.totalorder %s137, %s138
      %p150 = scmp.eq.s32.totalorder %s25, 1
      %p151 = por %p149, %p150
      %p153 = scmp.ne.s32.totalorder %s138, %s152
      %p154 = scmp.eq.s32.totalorder %s25, 0
      %p155 = por %p153, %p154
      %s157 = sadd.s32 %s156, 1
      %p160 = scmp.eq.s32.totalorder %s19, 1
      %p161 = scmp.ne.s32.totalorder %s156, %s158
      %p162 = scmp.eq.s32.totalorder %s19, 0
      %p163 = por %p161, %p162
      %p164 = scmp.ne.s32.totalorder %s156, %s158
      %p165 = scmp.eq.s32.totalorder %s24, 1
      %p166 = por %p164, %p165
      %p167 = scmp.ne.s32.totalorder %s158, %s159
      %p168 = scmp.eq.s32.totalorder %s24, 0
      %p169 = por %p167, %p168
      %p170 = scmp.ne.s32.totalorder %s158, %s159
      %p171 = scmp.eq.s32.totalorder %s25, 1
      %p172 = por %p170, %p171
      %p174 = scmp.ne.s32.totalorder %s159, %s173
      %p175 = scmp.eq.s32.totalorder %s25, 0
      %p176 = por %p174, %p175
      %s178 = sadd.s32 %s177, 1
      %p181 = scmp.eq.s32.totalorder %s19, 1
      %p182 = scmp.ne.s32.totalorder %s177, %s179
      %p183 = scmp.eq.s32.totalorder %s19, 0
      %p184 = por %p182, %p183
      %p185 = scmp.ne.s32.totalorder %s177, %s179
      %p186 = scmp.eq.s32.totalorder %s24, 1
      %p187 = por %p185, %p186
      %p188 = scmp.ne.s32.totalorder %s179, %s180
      %p189 = scmp.eq.s32.totalorder %s24, 0
      %p190 = por %p188, %p189
      %p191 = scmp.ne.s32.totalorder %s179, %s180
      %p192 = scmp.eq.s32.totalorder %s25, 1
      %p193 = por %p191, %p192
      %p195 = scmp.ne.s32.totalorder %s180, %s194
      %p196 = scmp.eq.s32.totalorder %s25, 0
      %p197 = por %p195, %p196
      %s199 = sadd.s32 %s198, 1
      %p202 = scmp.eq.s32.totalorder %s19, 1
      %p203 = scmp.ne.s32.totalorder %s198, %s200
      %p204 = scmp.eq.s32.totalorder %s19, 0
      %p205 = por %p203, %p204
      %p206 = scmp.ne.s32.totalorder %s198, %s200
      %p207 = scmp.eq.s32.totalorder %s24, 1
      %p208 = por %p206, %p207
      %p209 = scmp.ne.s32.totalorder %s200, %s201
      %p210 = scmp.eq.s32.totalorder %s24, 0
      %p211 = por %p209, %p210
      %p212 = scmp.ne.s32.totalorder %s200, %s201
      %p213 = scmp.eq.s32.totalorder %s25, 1
      %p214 = por %p212, %p213
      %p216 = scmp.ne.s32.totalorder %s201, %s215
      %p217 = scmp.eq.s32.totalorder %s25, 0
      %p218 = por %p216, %p217
      %s219 = ssub.s32 %s26, %s38
      %s220 = ssub.s32 %s27, %s34
      %s221 = sor.u32 %s219, %s220
      %p222 = scmp.eq.s32.totalorder %s221, 0
      %s224 = sadd.s32 %s223, 1
      %s225 = scalar_select %p222, %s223, %s224
      %p228 = pneg %p222
      %p229 = scmp.eq.s32.totalorder %s19, 1
      %p230 = por %p228, %p229
      %p231 = scmp.ne.s32.totalorder %s223, %s226
      %p232 = scmp.eq.s32.totalorder %s19, 0
      %p233 = por %p231, %p232
      %p234 = scmp.ne.s32.totalorder %s223, %s226
      %p235 = scmp.eq.s32.totalorder %s24, 1
      %p236 = por %p234, %p235
      %p237 = scmp.ne.s32.totalorder %s226, %s227
      %p238 = scmp.eq.s32.totalorder %s24, 0
      %p239 = por %p237, %p238
      %p240 = scmp.ne.s32.totalorder %s226, %s227
      %p241 = scmp.eq.s32.totalorder %s25, 1
      %p242 = por %p240, %p241
      %p244 = scmp.ne.s32.totalorder %s227, %s243
      %p245 = scmp.eq.s32.totalorder %s25, 0
      %p246 = por %p244, %p245
      %p247 = scmp.le.s32.totalorder 1, %s19
      %p248 = scmp.lt.s32.totalorder %s19, 3
      %p249 = pnand %p247, %p248
      %p250 = pneg %p249
      // Predicated region
      $region9: #{tpu_custom_call.1} parent=5 // pred_check
        _
      $region10: #{tpu_custom_call.1} parent=5 // pred_check_branch
        %252 = sbr.rel (%p249) target = $region12
      $region11: #{tpu_custom_call.1} parent=5 // pred_region
        %s253 = ssub.s32 %s19, 1
        // Predicated region
        $region13: #{tpu_custom_call.1} parent=11 // pred_check
          %p254 = pneg %p148
        $region14: #{tpu_custom_call.1} parent=11 // pred_check_branch
          %256 = sbr.rel (%p254) target = $region16
        $region15: #{tpu_custom_call.1} parent=11 // pred_region
          _
        $region16: #{tpu_custom_call.1} parent=11 // pred_fallthru
          _
        // Predicated region
        $region17: #{tpu_custom_call.1} parent=11 // pred_check
          %p257 = pneg %p169
        $region18: #{tpu_custom_call.1} parent=11 // pred_check_branch
          %259 = sbr.rel (%p257) target = $region20
        $region19: #{tpu_custom_call.1} parent=11 // pred_region
          _
        $region20: #{tpu_custom_call.1} parent=11 // pred_fallthru
          _
        // Predicated region
        $region21: #{tpu_custom_call.1} parent=11 // pred_check
          %p260 = pneg %p190
        $region22: #{tpu_custom_call.1} parent=11 // pred_check_branch
          %262 = sbr.rel (%p260) target = $region24
        $region23: #{tpu_custom_call.1} parent=11 // pred_region
          _
        $region24: #{tpu_custom_call.1} parent=11 // pred_fallthru
          _
        // Predicated region
        $region25: #{tpu_custom_call.1} parent=11 // pred_check
          %p263 = pneg %p211
        $region26: #{tpu_custom_call.1} parent=11 // pred_check_branch
          %265 = sbr.rel (%p263) target = $region28
        $region27: #{tpu_custom_call.1} parent=11 // pred_region
          _
        $region28: #{tpu_custom_call.1} parent=11 // pred_fallthru
          _
      $region12: #{tpu_custom_call.1} parent=5 // pred_fallthru
        _
      %p266 = scmp.lt.s32.totalorder %s19, 2
      // Predicated region
      $region29: #{tpu_custom_call.1} parent=5 // pred_check
        %p267 = pneg %p266
      $region30: #{tpu_custom_call.1} parent=5 // pred_check_branch
        %269 = sbr.rel (%p267) target = $region32
      $region31: #{tpu_custom_call.1} parent=5 // pred_region
        // Predicated region
        $region33: #{tpu_custom_call.1} parent=31 // pred_check
          %p270 = pneg %p53
        $region34: #{tpu_custom_call.1} parent=31 // pred_check_branch
          %272 = sbr.rel (%p270) target = $region36
        $region35: #{tpu_custom_call.1} parent=31 // pred_region
          %p273 = scmp.lt.s32.totalorder %s26, 1
          %s274 = scalar_select %p273, %s26, 1
          %p275 = scmp.lt.s32.totalorder %s27, 0
          %s276 = scalar_select %p275, %s27, 0
          %s277 = sadd.s32 %s276, %s274
          %s278 = smul.addr %s277, 4
          %s279 = scalar_lea.vmem %s0, %s278
        $region36: #{tpu_custom_call.1} parent=31 // pred_fallthru
          _
        // Predicated region
        $region37: #{tpu_custom_call.1} parent=31 // pred_check
          %p280 = pneg %p87
        $region38: #{tpu_custom_call.1} parent=31 // pred_check_branch
          %282 = sbr.rel (%p280) target = $region40
        $region39: #{tpu_custom_call.1} parent=31 // pred_region
          %s283 = ssub.s32 %s27, 1
          %p284 = scmp.gt.s32.totalorder %s283, 0
          %s285 = scalar_select %p284, %s283, 0
          %p286 = scmp.lt.s32.totalorder %s26, 1
          %s287 = scalar_select %p286, %s26, 1
          %p288 = scmp.lt.s32.totalorder %s285, 0
          %s289 = scalar_select %p288, %s285, 0
          %s290 = sadd.s32 %s289, %s287
          %s291 = smul.addr %s290, 4
          %s292 = scalar_lea.vmem %s1, %s291
          %s293 = ssub.s32 %s27, 1
          %p294 = scmp.gt.s32.totalorder %s293, 0
          %s295 = scalar_select %p294, %s293, 0
        $region40: #{tpu_custom_call.1} parent=31 // pred_fallthru
          _
        // Predicated region
        $region41: #{tpu_custom_call.1} parent=31 // pred_check
          %p296 = pneg %p121
        $region42: #{tpu_custom_call.1} parent=31 // pred_check_branch
          %298 = sbr.rel (%p296) target = $region44
        $region43: #{tpu_custom_call.1} parent=31 // pred_region
          %s299 = sand.u32 %s111, 1
          %s300 = scalar_lea.sflag [#allocation3], %s299
          %s301 = sand.u32 %s111, 1
          %s302 = smul.addr %s301, 4
          %s303 = scalar_lea.vmem [#allocation2], %s302
          %s304 = sadd.s32 %s27, 1
          %p305 = scmp.lt.s32.totalorder %s304, 0
          %s306 = scalar_select %p305, %s304, 0
          %308 = vsyncadd %s300, 0
          %s309 = sadd.s32 %s306, %s26
          %s310 = smul.addr %s309, 4
          %s311 = scalar_lea.hbm %s2, %s310
          %s313 = sshll.u32 %s311, 4
          %s314 = int_to_ptr.hbm [resolvable:$true] %s313
          %s315 = sshll.u32 %s303, 4
          %s316 = int_to_ptr.vmem [resolvable:$true] %s315
          %318 = dma.hbm_to_vmem [thread:$0]  %s314, 64, %s316, %s300
        $region44: #{tpu_custom_call.1} parent=31 // pred_fallthru
          _
      $region32: #{tpu_custom_call.1} parent=5 // pred_fallthru
        _
      %p319 = scmp.le.s32.totalorder 1, %s19
      %p320 = scmp.lt.s32.totalorder %s19, 3
      %p321 = pnand %p319, %p320
      %p322 = pneg %p321
      // Predicated region
      $region45: #{tpu_custom_call.1} parent=5 // pred_check
        _
      $region46: #{tpu_custom_call.1} parent=5 // pred_check_branch
        %324 = sbr.rel (%p321) target = $region48
      $region47: #{tpu_custom_call.1} parent=5 // pred_region
        %s325 = ssub.s32 %s19, 1
        %s326 = sand.u32 %s114, 1
        %s327 = scalar_lea.sflag [#allocation3], %s326
        %s328 = sand.u32 %s114, 1
        %s329 = smul.addr %s328, 4
        %s330 = scalar_lea.vmem [#allocation2], %s329
        // Predicated region
        $region49: #{tpu_custom_call.1} parent=47 // pred_check
          %p331 = pneg %p127
        $region50: #{tpu_custom_call.1} parent=47 // pred_check_branch
          %333 = sbr.rel (%p331) target = $region52
        $region51: #{tpu_custom_call.1} parent=47 // pred_region
          %335 = dma.done %s327, 64
        $region52: #{tpu_custom_call.1} parent=47 // pred_fallthru
          _
        %p336 = scmp.lt.s32.totalorder %s28, 1
        %s337 = scalar_select %p336, %s28, 1
        %p338 = scmp.lt.s32.totalorder %s29, 0
        %s339 = scalar_select %p338, %s29, 0
        %s340 = sadd.s32 %s339, %s337
        %s341 = smul.addr %s340, 4
        %s342 = scalar_lea.vmem %s0, %s341
        %p343 = pneg %p59
        %p344 = pneg %p56
        %s345 = ssub.s32 %s29, 1
        %p346 = scmp.gt.s32.totalorder %s345, 0
        %s347 = scalar_select %p346, %s345, 0
        %p348 = scmp.lt.s32.totalorder %s28, 1
        %s349 = scalar_select %p348, %s28, 1
        %p350 = scmp.lt.s32.totalorder %s347, 0
        %s351 = scalar_select %p350, %s347, 0
        %s352 = sadd.s32 %s351, %s349
        %s353 = smul.addr %s352, 4
        %s354 = scalar_lea.vmem %s1, %s353
        %p355 = pneg %p93
        %p356 = pneg %p90
        %s357 = sand.u32 %s114, 1
        %s358 = scalar_lea.sflag [#allocation3], %s357
        %s359 = sand.u32 %s114, 1
        %s360 = smul.addr %s359, 4
        %s361 = scalar_lea.vmem [#allocation2], %s360
        %p362 = pneg %p127
        %p363 = pneg %p124
        %p364 = pneg %p148
        %p365 = pneg %p145
        %p366 = pneg %p169
        %p367 = pneg %p166
        %p368 = pneg %p190
        %p369 = pneg %p187
        %p370 = pneg %p211
        %p371 = pneg %p208
        %p372 = pneg %p239
        %p373 = pneg %p236
        %s374 = sand.u32 %s226, 1
        %s375 = scalar_lea.sflag [#allocation4], %s374
        %s376 = sand.u32 %s226, 1
        %s377 = smul.addr %s376, 8
        %s378 = scalar_lea.vmem [#allocation5], %s377
        %p379 = scmp.lt.s32.totalorder %s28, 1
        %s380 = scalar_select %p379, %s28, 1
        %p381 = scmp.lt.s32.totalorder %s29, 0
        %s382 = scalar_select %p381, %s29, 0
        %s383 = sadd.s32 %s382, %s380
        %s384 = smul.addr %s383, 4
        %s385 = scalar_lea.vmem %s0, %s384
        %s386 = ssub.s32 %s29, 1
        %p387 = scmp.gt.s32.totalorder %s386, 0
        %s388 = scalar_select %p387, %s386, 0
        %p389 = scmp.lt.s32.totalorder %s28, 1
        %s390 = scalar_select %p389, %s28, 1
        %p391 = scmp.lt.s32.totalorder %s388, 0
        %s392 = scalar_select %p391, %s388, 0
        %s393 = sadd.s32 %s392, %s390
        %s394 = smul.addr %s393, 4
        %s395 = scalar_lea.vmem %s1, %s394
        %s396 = ssub.s32 %s29, 1
        %p397 = scmp.gt.s32.totalorder %s396, 0
        %s398 = scalar_select %p397, %s396, 0
        %s399 = sadd.s32 %s29, 1
        %p400 = scmp.lt.s32.totalorder %s399, 0
        %s401 = scalar_select %p400, %s399, 0
        %s402 = smul.u32 %s29, 128
        %v403 = vld [vmem:[%s4] sm:$0xff]
        %v404 = vld [vmem:[%s6] sm:$0xff]
        %v405 = vlaneseq
        %v406 = vshrl.u32 %v405, 7
        %v407 = vlaneseq
        %v408 = vand.u32 %v407, 127
        %vm409 = vcmp.eq.s32.totalorder %v406, %v408
        %v410 = vsel %vm409, 1, 0
        %v411 = vcvt.s32.f32 %v410
        %v412 = vadd.s32 %v408, 128
        %v413 = vld [vmem:[%s395] sm:$0xf]
        %v414 = vld [vmem:[%s385] sm:$0xf]
        %v415 = vld [vmem:[%s330] sm:$0xf]
        %417 = vrot.lane.b32.xlu0 %v413, 2
        %v418 = vpop.permute.xlu0 %417
        %421 = vrot.lane.b32.xlu0 %v414, 2
        %v422 = vpop.permute.xlu0 %421
        %425 = vrot.lane.b32.xlu0 %v415, 2
        %v426 = vpop.permute.xlu0 %425
        %vm428 = vcmask 15360
        %v429 = vsel %vm428, %v418, %v422
        %v430 = vsel %vm428, %v422, %v426
        %s431 = sadd.s32 %s402, 4294967294
        %v432 = vstv %s431
        %v433 = vadd.s32 %v432, %v408
        %v434 = vadd.s32 %v432, %v412
        %vm435 = vcmp.ge.s32.totalorder %v433, 0
        %vm436 = vcmp.ge.s32.totalorder %v434, 0
        %vm437 = vcmp.lt.s32.totalorder %v433, 16
        %vm438 = vcmp.lt.s32.totalorder %v434, 16
        %vm439 = vmand %vm435, %vm437
        %vm440 = vmand %vm436, %vm438
        %v441 = vsel %vm439, 1, 0
        %v442 = vsel %vm440, 1, 0
        %vm443 = vcmp.eq.s32.totalorder %v441, 1
        %vm444 = vcmp.eq.s32.totalorder %v442, 1
        %v445 = vsel %vm443, %v429, 0.0
        %v446 = vsel %vm444, %v430, 0.0
        %v447 = vld [vmem:[%s3] sm:$0xff]
        %vm448 = vcmask 31744
        %v450 = vsel %vm448, %v447, 0
        %vm452 = vcmask 1043456
        %v454 = vsel %vm452, %v445, 0
        %v457 = vsel %vm452, %v446, 0
        %459 = vmatpush.msra.mxu0 0.0
        %460 = vmatpush.msra.mxu0 0.0
        %461 = vmatpush.msra.mxu0 0.0
        %462 = vmatpush.msra.mxu0 0.0
        %463 = vmatpush.msra.mxu0 0.0
        %464 = vmatpush.msra.mxu0 0.0
        %465 = vmatpush.msra.mxu0 0.0
        %466 = vmatpush.msra.mxu0 0.0
        %467 = vmatpush.msra.mxu0 0.0
        %468 = vmatpush.msra.mxu0 0.0
        %469 = vmatpush.msra.mxu0 0.0
        %470 = vmatpush.msra.mxu0 0.0
        %471 = vmatpush.msra.mxu0 0.0
        %472 = vmatpush.msra.mxu0 0.0
        %473 = vmatpush.msra.mxu0 0.0
        %474 = vmatpush.msra.mxu0 %v454
        %475 = vmatmul.f32.gmra.mxu0 %v450
        %v476 = vpop.f32.mrf.mxu0
        %v477 = vadd.f32 0.0, %v476
        %478 = vdwg.mxu0
        %479 = vmatpush.msra.mxu0 0.0
        %480 = vmatpush.msra.mxu0 0.0
        %481 = vmatpush.msra.mxu0 0.0
        %482 = vmatpush.msra.mxu0 0.0
        %483 = vmatpush.msra.mxu0 0.0
        %484 = vmatpush.msra.mxu0 0.0
        %485 = vmatpush.msra.mxu0 0.0
        %486 = vmatpush.msra.mxu0 0.0
        %487 = vmatpush.msra.mxu0 0.0
        %488 = vmatpush.msra.mxu0 0.0
        %489 = vmatpush.msra.mxu0 0.0
        %490 = vmatpush.msra.mxu0 0.0
        %491 = vmatpush.msra.mxu0 0.0
        %492 = vmatpush.msra.mxu0 0.0
        %493 = vmatpush.msra.mxu0 0.0
        %494 = vmatpush.msra.mxu0 %v457
        %495 = vmatmul.f32.gmra.mxu0 %v450
        %v496 = vpop.f32.mrf.mxu0
        %v497 = vadd.f32 0.0, %v496
        %498 = vdwg.mxu0
        %500 = vset.pattern.permute.xlu0 0
        %501 = vperm.xlu0 %500, %v403
        %v502 = vpop.permute.xlu0 %501
        %v504 = vadd.f32 %v502, %v477
        %v505 = vadd.f32 %v502, %v497
        %s506 = scalar_lea.vmem %s3, 8
        %v507 = vld [vmem:[%s506] sm:$0xff]
        %508 = vrot.lane.b32.xlu0 %v445, 127
        %v509 = vpop.permute.xlu0 %508
        %510 = vrot.lane.b32.xlu0 %v446, 127
        %v511 = vpop.permute.xlu0 %510
        %vm512 = vcmask 1039360
        %v513 = vsel %vm512, %v509, %v511
        %v515 = vsel %vm448, %v507, 0
        %v517 = vsel %vm452, %v513, 0
        %v519 = vsel %vm452, %v511, 0
        %521 = vmatpush.msra.mxu0 0.0
        %522 = vmatpush.msra.mxu0 0.0
        %523 = vmatpush.msra.mxu0 0.0
        %524 = vmatpush.msra.mxu0 0.0
        %525 = vmatpush.msra.mxu0 0.0
        %526 = vmatpush.msra.mxu0 0.0
        %527 = vmatpush.msra.mxu0 0.0
        %528 = vmatpush.msra.mxu0 0.0
        %529 = vmatpush.msra.mxu0 0.0
        %530 = vmatpush.msra.mxu0 0.0
        %531 = vmatpush.msra.mxu0 0.0
        %532 = vmatpush.msra.mxu0 0.0
        %533 = vmatpush.msra.mxu0 0.0
        %534 = vmatpush.msra.mxu0 0.0
        %535 = vmatpush.msra.mxu0 0.0
        %536 = vmatpush.msra.mxu0 %v517
        %537 = vmatmul.f32.gmra.mxu0 %v515
        %v538 = vpop.f32.mrf.mxu0
        %v539 = vadd.f32 0.0, %v538
        %540 = vdwg.mxu0
        %541 = vmatpush.msra.mxu0 0.0
        %542 = vmatpush.msra.mxu0 0.0
        %543 = vmatpush.msra.mxu0 0.0
        %544 = vmatpush.msra.mxu0 0.0
        %545 = vmatpush.msra.mxu0 0.0
        %546 = vmatpush.msra.mxu0 0.0
        %547 = vmatpush.msra.mxu0 0.0
        %548 = vmatpush.msra.mxu0 0.0
        %549 = vmatpush.msra.mxu0 0.0
        %550 = vmatpush.msra.mxu0 0.0
        %551 = vmatpush.msra.mxu0 0.0
        %552 = vmatpush.msra.mxu0 0.0
        %553 = vmatpush.msra.mxu0 0.0
        %554 = vmatpush.msra.mxu0 0.0
        %555 = vmatpush.msra.mxu0 0.0
        %556 = vmatpush.msra.mxu0 %v519
        %557 = vmatmul.f32.gmra.mxu0 %v515
        %v558 = vpop.f32.mrf.mxu0
        %v559 = vadd.f32 0.0, %v558
        %560 = vdwg.mxu0
        %v561 = vadd.f32 %v504, %v539
        %v562 = vadd.f32 %v505, %v559
        %s563 = scalar_lea.vmem %s3, 16
        %v564 = vld [vmem:[%s563] sm:$0xff]
        %565 = vrot.lane.b32.xlu0 %v445, 126
        %v566 = vpop.permute.xlu0 %565
        %567 = vrot.lane.b32.xlu0 %v446, 126
        %v568 = vpop.permute.xlu0 %567
        %vm569 = vcmask 1031168
        %v570 = vsel %vm569, %v566, %v568
        %v572 = vsel %vm448, %v564, 0
        %v574 = vsel %vm452, %v570, 0
        %v576 = vsel %vm452, %v568, 0
        %578 = vmatpush.msra.mxu0 0.0
        %579 = vmatpush.msra.mxu0 0.0
        %580 = vmatpush.msra.mxu0 0.0
        %581 = vmatpush.msra.mxu0 0.0
        %582 = vmatpush.msra.mxu0 0.0
        %583 = vmatpush.msra.mxu0 0.0
        %584 = vmatpush.msra.mxu0 0.0
        %585 = vmatpush.msra.mxu0 0.0
        %586 = vmatpush.msra.mxu0 0.0
        %587 = vmatpush.msra.mxu0 0.0
        %588 = vmatpush.msra.mxu0 0.0
        %589 = vmatpush.msra.mxu0 0.0
        %590 = vmatpush.msra.mxu0 0.0
        %591 = vmatpush.msra.mxu0 0.0
        %592 = vmatpush.msra.mxu0 0.0
        %593 = vmatpush.msra.mxu0 %v574
        %594 = vmatmul.f32.gmra.mxu0 %v572
        %v595 = vpop.f32.mrf.mxu0
        %v596 = vadd.f32 0.0, %v595
        %597 = vdwg.mxu0
        %598 = vmatpush.msra.mxu0 0.0
        %599 = vmatpush.msra.mxu0 0.0
        %600 = vmatpush.msra.mxu0 0.0
        %601 = vmatpush.msra.mxu0 0.0
        %602 = vmatpush.msra.mxu0 0.0
        %603 = vmatpush.msra.mxu0 0.0
        %604 = vmatpush.msra.mxu0 0.0
        %605 = vmatpush.msra.mxu0 0.0
        %606 = vmatpush.msra.mxu0 0.0
        %607 = vmatpush.msra.mxu0 0.0
        %608 = vmatpush.msra.mxu0 0.0
        %609 = vmatpush.msra.mxu0 0.0
        %610 = vmatpush.msra.mxu0 0.0
        %611 = vmatpush.msra.mxu0 0.0
        %612 = vmatpush.msra.mxu0 0.0
        %613 = vmatpush.msra.mxu0 %v576
        %614 = vmatmul.f32.gmra.mxu0 %v572
        %v615 = vpop.f32.mrf.mxu0
        %v616 = vadd.f32 0.0, %v615
        %617 = vdwg.mxu0
        %v618 = vadd.f32 %v561, %v596
        %v619 = vadd.f32 %v562, %v616
        %v620 = vmax.f32 %v618, 0.0
        %v621 = vmax.f32 %v619, 0.0
        %s622 = sadd.s32 %s402, 4294967295
        %v623 = vstv %s622
        %v624 = vadd.s32 %v623, %v408
        %v625 = vadd.s32 %v623, %v412
        %vm626 = vcmp.ge.s32.totalorder %v624, 0
        %vm627 = vcmp.ge.s32.totalorder %v625, 0
        %vm628 = vcmp.lt.s32.totalorder %v624, 16
        %vm629 = vcmp.lt.s32.totalorder %v625, 16
        %vm630 = vmand %vm626, %vm628
        %vm631 = vmand %vm627, %vm629
        %v632 = vsel %vm630, 1, 0
        %v633 = vsel %vm631, 1, 0
        %vm634 = vcmp.eq.s32.totalorder %v632, 1
        %vm635 = vcmp.eq.s32.totalorder %v633, 1
        %v636 = vsel %vm634, %v620, 0.0
        %v637 = vsel %vm635, %v621, 0.0
        %v639 = vsel %vm448, %v411, 0
        %641 = vmatpush.msra.mxu0 0.0
        %642 = vmatpush.msra.mxu0 0.0
        %643 = vmatpush.msra.mxu0 0.0
        %644 = vmatpush.msra.mxu0 0.0
        %645 = vmatpush.msra.mxu0 0.0
        %646 = vmatpush.msra.mxu0 0.0
        %647 = vmatpush.msra.mxu0 0.0
        %648 = vmatpush.msra.mxu0 0.0
        %649 = vmatpush.msra.mxu0 0.0
        %650 = vmatpush.msra.mxu0 0.0
        %651 = vmatpush.msra.mxu0 0.0
        %652 = vmatpush.msra.mxu0 0.0
        %653 = vmatpush.msra.mxu0 0.0
        %654 = vmatpush.msra.mxu0 0.0
        %655 = vmatpush.msra.mxu0 0.0
        %656 = vmatpush.msra.mxu0 %v574
        %657 = vmatmul.f32.gmra.mxu0 %v639
        %v658 = vpop.f32.mrf.mxu0
        %v659 = vadd.f32 0.0, %v658
        %660 = vdwg.mxu0
        %662 = vset.pattern.permute.xlu0 0
        %663 = vperm.xlu0 %662, %v404
        %v664 = vpop.permute.xlu0 %663
        %v666 = vadd.f32 %v664, %v659
        %v667 = vld [vmem:[%s5] sm:$0xff]
        %vm668 = vcmask 64512
        %v670 = vsel %vm668, %v667, 0
        %672 = vmatpush.msra.mxu0 0.0
        %673 = vmatpush.msra.mxu0 0.0
        %674 = vmatpush.msra.mxu0 0.0
        %675 = vmatpush.msra.mxu0 0.0
        %676 = vmatpush.msra.mxu0 0.0
        %677 = vmatpush.msra.mxu0 0.0
        %678 = vmatpush.msra.mxu0 0.0
        %679 = vmatpush.msra.mxu0 0.0
        %680 = vmatpush.msra.mxu0 0.0
        %681 = vmatpush.msra.mxu0 0.0
        %682 = vmatpush.msra.mxu0 0.0
        %683 = vmatpush.msra.mxu0 0.0
        %684 = vmatpush.msra.mxu0 0.0
        %685 = vmatpush.msra.mxu0 0.0
        %686 = vmatpush.msra.mxu0 0.0
        %687 = vmatpush.msra.mxu0 %v636
        %688 = vmatmul.f32.gmra.mxu0 %v670
        %v689 = vpop.f32.mrf.mxu0
        %v690 = vadd.f32 0.0, %v689
        %691 = vdwg.mxu0
        %v692 = vadd.f32 %v666, %v690
        %s693 = scalar_lea.vmem %s5, 8
        %v694 = vld [vmem:[%s693] sm:$0xff]
        %697 = vrot.lane.b32.xlu0 %v636, 127
        %v698 = vpop.permute.xlu0 %697
        %699 = vrot.lane.b32.xlu0 %v637, 127
        %v700 = vpop.permute.xlu0 %699
        %v701 = vsel %vm512, %v698, %v700
        %v704 = vsel %vm668, %v694, 0
        %706 = vmatpush.msra.mxu0 0.0
        %707 = vmatpush.msra.mxu0 0.0
        %708 = vmatpush.msra.mxu0 0.0
        %709 = vmatpush.msra.mxu0 0.0
        %710 = vmatpush.msra.mxu0 0.0
        %711 = vmatpush.msra.mxu0 0.0
        %712 = vmatpush.msra.mxu0 0.0
        %713 = vmatpush.msra.mxu0 0.0
        %714 = vmatpush.msra.mxu0 0.0
        %715 = vmatpush.msra.mxu0 0.0
        %716 = vmatpush.msra.mxu0 0.0
        %717 = vmatpush.msra.mxu0 0.0
        %718 = vmatpush.msra.mxu0 0.0
        %719 = vmatpush.msra.mxu0 0.0
        %720 = vmatpush.msra.mxu0 0.0
        %721 = vmatpush.msra.mxu0 %v701
        %722 = vmatmul.f32.gmra.mxu0 %v704
        %v723 = vpop.f32.mrf.mxu0
        %v724 = vadd.f32 0.0, %v723
        %725 = vdwg.mxu0
        %v726 = vadd.f32 %v692, %v724
        %s727 = scalar_lea.vmem %s5, 16
        %v728 = vld [vmem:[%s727] sm:$0xff]
        %729 = vrot.lane.b32.xlu0 %v636, 126
        %v730 = vpop.permute.xlu0 %729
        %731 = vrot.lane.b32.xlu0 %v637, 126
        %v732 = vpop.permute.xlu0 %731
        %v733 = vsel %vm569, %v730, %v732
        %v736 = vsel %vm668, %v728, 0
        %738 = vmatpush.msra.mxu0 0.0
        %739 = vmatpush.msra.mxu0 0.0
        %740 = vmatpush.msra.mxu0 0.0
        %741 = vmatpush.msra.mxu0 0.0
        %742 = vmatpush.msra.mxu0 0.0
        %743 = vmatpush.msra.mxu0 0.0
        %744 = vmatpush.msra.mxu0 0.0
        %745 = vmatpush.msra.mxu0 0.0
        %746 = vmatpush.msra.mxu0 0.0
        %747 = vmatpush.msra.mxu0 0.0
        %748 = vmatpush.msra.mxu0 0.0
        %749 = vmatpush.msra.mxu0 0.0
        %750 = vmatpush.msra.mxu0 0.0
        %751 = vmatpush.msra.mxu0 0.0
        %752 = vmatpush.msra.mxu0 0.0
        %753 = vmatpush.msra.mxu0 %v733
        %754 = vmatmul.f32.gmra.mxu0 %v736
        %v755 = vpop.f32.mrf.mxu0
        %v756 = vadd.f32 0.0, %v755
        %757 = vdwg.mxu0
        %v758 = vadd.f32 %v726, %v756
        %v759 = vmax.f32 %v758, 0.0
        %760 = vst [vmem:[%s378] sm:$0xff] %v759
        %s761 = sand.u32 %s226, 1
        %s762 = scalar_lea.sflag [#allocation4], %s761
        %s763 = sand.u32 %s226, 1
        %s764 = smul.addr %s763, 8
        %s765 = scalar_lea.vmem [#allocation5], %s764
        // Predicated region
        $region53: #{tpu_custom_call.1} parent=47 // pred_check
          %p766 = pneg %p236
        $region54: #{tpu_custom_call.1} parent=47 // pred_check_branch
          %768 = sbr.rel (%p766) target = $region56
        $region55: #{tpu_custom_call.1} parent=47 // pred_region
          %770 = vsyncadd %s762, 0
          %s771 = sadd.s32 %s29, %s28
          %s772 = smul.addr %s771, 8
          %s773 = scalar_lea.hbm %s7, %s772
          %s775 = sshll.u32 %s765, 4
          %s776 = int_to_ptr.vmem [resolvable:$true] %s775
          %s777 = sshll.u32 %s773, 4
          %s778 = int_to_ptr.hbm [resolvable:$true] %s777
          %780 = dma.vmem_to_hbm [thread:$0]  %s776, 128, %s778, %s762
        $region56: #{tpu_custom_call.1} parent=47 // pred_fallthru
          _
      $region48: #{tpu_custom_call.1} parent=5 // pred_fallthru
        _
      %p781 = scmp.le.s32.totalorder 2, %s19
      // Predicated region
      $region57: #{tpu_custom_call.1} parent=5 // pred_check
        %p782 = pneg %p781
      $region58: #{tpu_custom_call.1} parent=5 // pred_check_branch
        %784 = sbr.rel (%p782) target = $region60
      $region59: #{tpu_custom_call.1} parent=5 // pred_region
        %s785 = ssub.s32 %s19, 2
        // Predicated region
        $region61: #{tpu_custom_call.1} parent=59 // pred_check
          %p786 = pneg %p242
        $region62: #{tpu_custom_call.1} parent=59 // pred_check_branch
          %788 = sbr.rel (%p786) target = $region64
        $region63: #{tpu_custom_call.1} parent=59 // pred_region
          %s789 = sand.u32 %s227, 1
          %s790 = scalar_lea.sflag [#allocation4], %s789
          %s791 = sand.u32 %s227, 1
          %s792 = smul.addr %s791, 8
          %s793 = scalar_lea.vmem [#allocation5], %s792
          %795 = dma.done %s790, 128
        $region64: #{tpu_custom_call.1} parent=59 // pred_fallthru
          _
      $region60: #{tpu_custom_call.1} parent=5 // pred_fallthru
        _
    $region6: #{tpu_custom_call.1} parent=1 // loop_footer
      %s23 = sadd.s32 1, %s19
    $region7: #{tpu_custom_call.1} parent=1 // loop_footer_branch
      %18 = sbr.rel target = $region3
    $region8: #{tpu_custom_call.1} parent=1 // loop_exit
      _
    %796 = vsyncpa [#allocation3], 1
    %s797 = scalar_lea.sflag [#allocation3], 1
    %798 = vsyncpa %s797, 1
    %799 = vsyncpa [#allocation4], 1
    %s800 = scalar_lea.sflag [#allocation4], 1
    %801 = vsyncpa %s800, 1

</llo_original>
